<compile_context>
chip_gen: v5e
topology: v5e:2x2
jax: 0.10.0
libtpu: 0.0.40
codegen_flags: <defaults>
</compile_context>

<pallas_src>
import functools

import jax
import jax.numpy as jnp
from jax.experimental import pallas as pl
from jax.experimental.pallas import tpu as pltpu


def _focal_loss_kernel(logits_ref, targets_ref, partial_ref, *,
                       gamma, pos_weight, binary_targets,
                       block_rows, n_rows, mask_rows):
    x = logits_ref[...].astype(jnp.float32)
    t = targets_ref[...].astype(jnp.float32)

    # Shared transcendentals (EUP).
    e = jnp.exp(-jnp.abs(x))           # exp(-|x|)
    log1p_e = jnp.log1p(e)             # log(1 + exp(-|x|))

    if pos_weight is None:
        # Numerically-stable BCE-with-logits (same form torch uses):
        #   bce = max(x, 0) - x*t + log(1 + exp(-|x|))
        bce = jnp.maximum(x, 0.0) - x * t + log1p_e
    else:
        # TODO(synk): per-class tensor pos_weight would need an extra (1, C) input ref.
        pw = jnp.float32(pos_weight)
        softplus_neg_x = jnp.maximum(-x, 0.0) + log1p_e   # -log_sigmoid(x)
        softplus_pos_x = jnp.maximum(x, 0.0) + log1p_e    # -log(1 - sigmoid(x))
        bce = pw * t * softplus_neg_x + (1.0 - t) * softplus_pos_x

    if pos_weight is None and binary_targets:
        # For binary targets exp(-bce) == t*sig + (1-t)*(1-sig). Build it from
        # sigmoid(x) so we skip a third transcendental; one Newton step on the
        # approximate reciprocal restores ~full f32 accuracy.
        denom = 1.0 + e
        inv = pl.reciprocal(denom, approx=True)
        inv = inv * (2.0 - denom * inv)                     # Newton refine
        sig = jnp.where(x >= 0.0, 1.0, e) * inv             # sigmoid(x)
        one_m_sig = jnp.where(x >= 0.0, e, 1.0) * inv       # 1 - sigmoid(x)
        one_minus_pt = t * one_m_sig + (1.0 - t) * sig      # no cancellation
    else:
        one_minus_pt = 1.0 - jnp.exp(-bce)

    if isinstance(gamma, int):
        if gamma <= 0:
            focal = bce
        else:
            mod = one_minus_pt
            for _ in range(gamma - 1):                      # gamma-1 extra muls
                mod = mod * one_minus_pt
            focal = mod * bce
    else:
        focal = jnp.power(one_minus_pt, jnp.float32(gamma)) * bce

    if mask_rows:
        row = (pl.program_id(0) * block_rows
               + jax.lax.broadcasted_iota(jnp.int32, focal.shape, 0))
        focal = jnp.where(row < n_rows, focal, 0.0)

    # Per-block partial sum; alpha / mean applied once in the wrapper.
    partial_ref[0, 0] = jnp.sum(focal)


_TARGET_TILE_BYTES = 2 * 1024 * 1024   # per-input f32 tile; 2 in x 2 bufs = 8 MiB


def _pick_block_rows(n_rows, n_cols, tile_bytes):
    rows = (tile_bytes // (n_cols * 4)) // 8 * 8
    rows = max(rows, 8)
    if n_rows <= rows:
        return n_rows          # single full-height block (no row tiling)
    return rows                # multiple of 8, tail handled by masking


def focal_loss(logits, targets, *, gamma=2, alpha=None, pos_weight=None,
               reduction='mean', binary_targets=True, block_rows=None):
    """Focal loss computed in a Pallas TPU kernel (reduction='mean'/'sum')."""
    assert logits.shape == targets.shape
    assert logits.ndim == 2, "expects [batch, num_labels] inputs"
    if reduction not in ('mean', 'sum'):
        # TODO(synk): reduction='none' (per-element output) not implemented here.
        raise NotImplementedError("reduction must be 'mean' or 'sum'")
    n_rows, n_cols = logits.shape

    if isinstance(gamma, float) and float(gamma).is_integer() and gamma >= 0:
        gamma = int(gamma)

    if block_rows is None:
        block_rows = _pick_block_rows(n_rows, n_cols, _TARGET_TILE_BYTES)
    num_blocks = pl.cdiv(n_rows, block_rows)
    mask_rows = (n_rows % block_rows) != 0

    kernel = functools.partial(
        _focal_loss_kernel,
        gamma=gamma, pos_weight=pos_weight, binary_targets=binary_targets,
        block_rows=block_rows, n_rows=n_rows, mask_rows=mask_rows)

    tile_bytes = block_rows * n_cols * 4
    # 2 inputs x 2 pipeline buffers + slack; keep within v7x's 64 MiB VMEM.
    vmem_limit = int(min(max(4 * tile_bytes + (2 << 20), 32 << 20), 64 << 20))

    partials = pl.pallas_call(
        kernel,
        out_shape=jax.ShapeDtypeStruct((num_blocks, 1), jnp.float32),
        grid_spec=pltpu.PrefetchScalarGridSpec(
            num_scalar_prefetch=0,
            grid=(num_blocks,),
            in_specs=[
                pl.BlockSpec((block_rows, n_cols), lambda i: (i, 0)),
                pl.BlockSpec((block_rows, n_cols), lambda i: (i, 0)),
            ],
            out_specs=pl.BlockSpec(
                (1, 1), lambda i: (i, 0),
                memory_space=pltpu.MemorySpace.SMEM),
        ),
        compiler_params=pltpu.CompilerParams(
            dimension_semantics=("parallel",),
            vmem_limit_bytes=vmem_limit),
    )(logits, targets)

    total = jnp.sum(partials)
    if alpha is not None:
        total = jnp.float32(alpha) * total
    if reduction == 'mean':
        total = total / jnp.float32(n_rows * n_cols)
    return total


def focal_loss_ref(logits, targets, gamma=2, alpha=None, pos_weight=None,
                   reduction='mean'):
    """Pure-JAX reference mirroring the torch module."""
    x = logits.astype(jnp.float32)
    t = targets.astype(jnp.float32)
    pw = 1.0 if pos_weight is None else pos_weight
    log_sig = -jax.nn.softplus(-x)
    log_1m_sig = -jax.nn.softplus(x)
    bce = -(pw * t * log_sig + (1.0 - t) * log_1m_sig)
    pt = jnp.exp(-bce)
    fl = (1.0 - pt) ** gamma * bce
    if alpha is not None:
        fl = alpha * fl
    if reduction == 'mean':
        return fl.mean()
    return fl.sum()


if __name__ == "__main__":
    key = jax.random.PRNGKey(0)
    k1, k2, k3, k4 = jax.random.split(key, 4)

    # Multi-label setup matching the fusion model: batch=64, num_labels=128.
    N, C = 64, 128
    logits = jax.random.normal(k1, (N, C), dtype=jnp.float32) * 2.0
    targets = (jax.random.uniform(k2, (N, C)) < 0.3).astype(jnp.float32)

    out = focal_loss(logits, targets, gamma=2)
    out = jax.block_until_ready(out)
    ref = focal_loss_ref(logits, targets, gamma=2)
    assert jnp.allclose(out, ref, rtol=5e-5, atol=1e-7), (out, ref)

    # Multi-block + tail-masking path (rows not a multiple of the block),
    # with alpha and sum reduction; small forced block exercises the grid.
    N2, C2 = 60, 96
    logits2 = jax.random.normal(k3, (N2, C2), dtype=jnp.float32) * 3.0
    targets2 = (jax.random.uniform(k4, (N2, C2)) < 0.5).astype(jnp.float32)
    out2 = focal_loss(logits2, targets2, gamma=2, alpha=0.25,
                      reduction='sum', block_rows=16)
    out2 = jax.block_until_ready(out2)
    ref2 = focal_loss_ref(logits2, targets2, gamma=2, alpha=0.25,
                          reduction='sum')
    assert jnp.allclose(out2, ref2, rtol=5e-5, atol=1e-6), (out2, ref2)

    print("KERNEL_OK")
</pallas_src>

<mosaic_0001>
module attributes {stable_mosaic.version = 11 : i64} {
  func.func @_focal_loss_kernel(%arg0: i32, %arg1: memref<64x128xf32, #tpu.memory_space<vmem>>, %arg2: memref<64x128xf32, #tpu.memory_space<vmem>>, %arg3: memref<1x1xf32, #tpu.memory_space<smem>>) attributes {dimension_semantics = [#tpu.dimension_semantics<parallel>], iteration_bounds = array<i64: 1>, scalar_prefetch = 0 : i64, scratch_operands = 0 : i64, tpu.core_type = #tpu.core_type<tc>, window_params = [{transform_indices = @transform_0, window_bounds = array<i64: 64, 128>}, {transform_indices = @transform_1, window_bounds = array<i64: 64, 128>}, {transform_indices = @transform_2, window_bounds = array<i64: 1, 1>}]} {
    %c0 = arith.constant 0 : index
    %c0_0 = arith.constant 0 : index
    %0 = vector.load %arg1[%c0, %c0_0] : memref<64x128xf32, #tpu.memory_space<vmem>>, vector<64x128xf32>
    %c0_1 = arith.constant 0 : index
    %c0_2 = arith.constant 0 : index
    %1 = vector.load %arg2[%c0_1, %c0_2] : memref<64x128xf32, #tpu.memory_space<vmem>>, vector<64x128xf32>
    %2 = math.absf %0 : vector<64x128xf32>
    %cst = arith.constant 0.000000e+00 : f32
    %3 = vector.broadcast %cst : f32 to vector<64x128xf32>
    %4 = arith.subf %3, %2 : vector<64x128xf32>
    %5 = math.exp %4 : vector<64x128xf32>
    %6 = math.log1p %5 : vector<64x128xf32>
    %cst_3 = arith.constant 0.000000e+00 : f32
    %7 = vector.broadcast %cst_3 : f32 to vector<64x128xf32>
    %8 = arith.maximumf %0, %7 : vector<64x128xf32>
    %9 = arith.mulf %0, %1 : vector<64x128xf32>
    %10 = arith.subf %8, %9 : vector<64x128xf32>
    %11 = arith.addf %10, %6 : vector<64x128xf32>
    %cst_4 = arith.constant 1.000000e+00 : f32
    %12 = vector.broadcast %cst_4 : f32 to vector<64x128xf32>
    %13 = arith.addf %12, %5 : vector<64x128xf32>
    %14 = tpu.reciprocal %13 {approx = true} : vector<64x128xf32> -> vector<64x128xf32>
    %15 = arith.mulf %13, %14 : vector<64x128xf32>
    %cst_5 = arith.constant 2.000000e+00 : f32
    %16 = vector.broadcast %cst_5 : f32 to vector<64x128xf32>
    %17 = arith.subf %16, %15 : vector<64x128xf32>
    %18 = arith.mulf %14, %17 : vector<64x128xf32>
    %cst_6 = arith.constant 0.000000e+00 : f32
    %19 = vector.broadcast %cst_6 : f32 to vector<64x128xf32>
    %20 = arith.cmpf oge, %0, %19 : vector<64x128xf32>
    %cst_7 = arith.constant 1.000000e+00 : f32
    %21 = vector.broadcast %cst_7 : f32 to vector<64x128xf32>
    %22 = arith.select %20, %21, %5 : vector<64x128xi1>, vector<64x128xf32>
    %23 = arith.mulf %22, %18 : vector<64x128xf32>
    %cst_8 = arith.constant 0.000000e+00 : f32
    %24 = vector.broadcast %cst_8 : f32 to vector<64x128xf32>
    %25 = arith.cmpf oge, %0, %24 : vector<64x128xf32>
    %cst_9 = arith.constant 1.000000e+00 : f32
    %26 = vector.broadcast %cst_9 : f32 to vector<64x128xf32>
    %27 = arith.select %25, %5, %26 : vector<64x128xi1>, vector<64x128xf32>
    %28 = arith.mulf %27, %18 : vector<64x128xf32>
    %29 = arith.mulf %1, %28 : vector<64x128xf32>
    %cst_10 = arith.constant 1.000000e+00 : f32
    %30 = vector.broadcast %cst_10 : f32 to vector<64x128xf32>
    %31 = arith.subf %30, %1 : vector<64x128xf32>
    %32 = arith.mulf %31, %23 : vector<64x128xf32>
    %33 = arith.addf %29, %32 : vector<64x128xf32>
    %34 = arith.mulf %33, %33 : vector<64x128xf32>
    %35 = arith.mulf %34, %11 : vector<64x128xf32>
    %36 = vector.shape_cast %35 : vector<64x128xf32> to vector<1x64x128xf32>
    %cst_11 = arith.constant dense<0.000000e+00> : vector<1xf32>
    %37 = vector.multi_reduction <add>, %36, %cst_11 [1, 2] : vector<1x64x128xf32> to vector<1xf32>
    %38 = vector.shape_cast %37 : vector<1xf32> to vector<1x1x1xf32>
    %39 = vector.extract %38[0, 0, 0] : f32 from vector<1x1x1xf32>
    %c0_12 = arith.constant 0 : index
    %c0_13 = arith.constant 0 : index
    %40 = memref.load %arg3[%c0_12, %c0_13] : memref<1x1xf32, #tpu.memory_space<smem>>
    memref.store %39, %arg3[%c0_12, %c0_13] : memref<1x1xf32, #tpu.memory_space<smem>>
    return
  }
  func.func @transform_0(%arg0: i32) -> (i32, i32) {
    %c0_i32 = arith.constant 0 : i32
    %c0_i32_0 = arith.constant 0 : i32
    return %arg0, %c0_i32 : i32, i32
  }
  func.func @transform_1(%arg0: i32) -> (i32, i32) {
    %c0_i32 = arith.constant 0 : i32
    %c0_i32_0 = arith.constant 0 : i32
    return %arg0, %c0_i32 : i32, i32
  }
  func.func @transform_2(%arg0: i32) -> (i32, i32) {
    %c0_i32 = arith.constant 0 : i32
    %c0_i32_0 = arith.constant 0 : i32
    return %arg0, %c0_i32 : i32, i32
  }
}

</mosaic_0001>

<llo_original>
// kernel: tpu_custom_call.1
$region0: #{tpu_custom_call.1}
  #allocation0 [shape = 'u32[]', space=smem, size = 0x4, offset = 0x4, fixed_abs, tag = 'smem constant byte address 0x4 - core index']
  #allocation1 [shape = 'u32[72,128]{1,0:T(1,128)}', space=vmem, size = 0x9000, scoped, tag = 'internal scratch']
  %s0 = inlined_call_operand.hbm [shape: f32[64,128], index: 0, kind: input, shape index: {}]
  %s1 = inlined_call_operand.hbm [shape: f32[64,128], index: 1, kind: input, shape index: {}]
  %s2 = inlined_call_operand.hbm [shape: f32[1,1], index: 2, kind: output, shape index: {}]
  %s3 = sld [smem:[#allocation0]]
  $region26: #{tpu_custom_call.1} parent=0
    _
  %s5 = ssub.s32 1, %s3
  %s6 = scalar_select 0, %s5, %s3
  $region1: #{tpu_custom_call.1} parent=0
    #allocation2 [shape = 'u8[32768]{0}', space=vmem, size = 0x8000, scoped, tag = 'input window, operand 0, single buffered']
    #allocation3 [shape = 's32[1]{0}', space=sflag, size = 0x4, scoped, tag = 'scoped memory for tpu_custom_call.1']
    #allocation4 [shape = 's32[1]{0}', space=sflag, size = 0x4, scoped, tag = 'scoped memory for tpu_custom_call.1']
    #allocation5 [shape = 'u8[32768]{0}', space=vmem, size = 0x8000, scoped, tag = 'input window, operand 1, single buffered']
    #allocation6 [shape = 's32[1]{0}', space=sflag, size = 0x4, scoped, tag = 'scoped memory for tpu_custom_call.1']
    #allocation7 [shape = 'u8[512]{0}', space=smem, size = 0x200, scoped, tag = 'output window, operand 0, single buffered']
    %7 = vsyncpa [#allocation3], 0
    %8 = vsyncpa [#allocation6], 0
    %9 = vsyncpa [#allocation4], 0
    // Predicated region
    $region2: #{tpu_custom_call.1} parent=1 // pred_check
      _
    $region3: #{tpu_custom_call.1} parent=1 // pred_check_branch
      %11 = sbr.rel (0) target = $region5
    $region4: #{tpu_custom_call.1} parent=1 // pred_region
      %13 = vsyncadd [#allocation3], 0
      %s14 = sshll.u32 %s0, 4
      %s15 = int_to_ptr.hbm [resolvable:$true] %s14
      %s16 = sshll.u32 [#allocation2], 4
      %s17 = int_to_ptr.vmem [resolvable:$true] %s16
      %22 = dma.hbm_to_vmem [thread:$0]  %s15, 1024, %s17, [#allocation3], 128, 128, 8
    $region5: #{tpu_custom_call.1} parent=1 // pred_fallthru
      _
    // Predicated region
    $region6: #{tpu_custom_call.1} parent=1 // pred_check
      _
    $region7: #{tpu_custom_call.1} parent=1 // pred_check_branch
      %24 = sbr.rel (0) target = $region9
    $region8: #{tpu_custom_call.1} parent=1 // pred_region
      %26 = vsyncadd [#allocation6], 0
      %s27 = sshll.u32 %s1, 4
      %s28 = int_to_ptr.hbm [resolvable:$true] %s27
      %s29 = sshll.u32 [#allocation5], 4
      %s30 = int_to_ptr.vmem [resolvable:$true] %s29
      %35 = dma.hbm_to_vmem [thread:$0]  %s28, 1024, %s30, [#allocation6], 128, 128, 8
    $region9: #{tpu_custom_call.1} parent=1 // pred_fallthru
      _
    // Predicated region
    $region10: #{tpu_custom_call.1} parent=1 // pred_check
      _
    $region11: #{tpu_custom_call.1} parent=1 // pred_check_branch
      %37 = sbr.rel (0) target = $region13
    $region12: #{tpu_custom_call.1} parent=1 // pred_region
      %39 = dma.done [#allocation3], 1024
    $region13: #{tpu_custom_call.1} parent=1 // pred_fallthru
      _
    // Predicated region
    $region14: #{tpu_custom_call.1} parent=1 // pred_check
      _
    $region15: #{tpu_custom_call.1} parent=1 // pred_check_branch
      %41 = sbr.rel (0) target = $region17
    $region16: #{tpu_custom_call.1} parent=1 // pred_region
      %43 = dma.done [#allocation6], 1024
    $region17: #{tpu_custom_call.1} parent=1 // pred_fallthru
      _
    %v44 = vld [vmem:[#allocation2] sm:$0xff]
    %v45 = vld [vmem:[#allocation2 + $0x8] sm:$0xff]
    %v46 = vld [vmem:[#allocation2 + $0x10] sm:$0xff]
    %v47 = vld [vmem:[#allocation2 + $0x18] sm:$0xff]
    %v48 = vld [vmem:[#allocation2 + $0x20] sm:$0xff]
    %v49 = vld [vmem:[#allocation2 + $0x28] sm:$0xff]
    %v50 = vld [vmem:[#allocation2 + $0x30] sm:$0xff]
    %v51 = vld [vmem:[#allocation2 + $0x38] sm:$0xff]
    %v52 = vld [vmem:[#allocation5] sm:$0xff]
    %v53 = vld [vmem:[#allocation5 + $0x8] sm:$0xff]
    %v54 = vld [vmem:[#allocation5 + $0x10] sm:$0xff]
    %v55 = vld [vmem:[#allocation5 + $0x18] sm:$0xff]
    %v56 = vld [vmem:[#allocation5 + $0x20] sm:$0xff]
    %v57 = vld [vmem:[#allocation5 + $0x28] sm:$0xff]
    %v58 = vld [vmem:[#allocation5 + $0x30] sm:$0xff]
    %v59 = vld [vmem:[#allocation5 + $0x38] sm:$0xff]
    %v60 = vand.u32 2147483647, %v44
    %v61 = vand.u32 2147483647, %v45
    %v62 = vand.u32 2147483647, %v46
    %v63 = vand.u32 2147483647, %v47
    %v64 = vand.u32 2147483647, %v48
    %v65 = vand.u32 2147483647, %v49
    %v66 = vand.u32 2147483647, %v50
    %v67 = vand.u32 2147483647, %v51
    %v68 = vsub.f32 0.0, %v60
    %v69 = vsub.f32 0.0, %v61
    %v70 = vsub.f32 0.0, %v62
    %v71 = vsub.f32 0.0, %v63
    %v72 = vsub.f32 0.0, %v64
    %v73 = vsub.f32 0.0, %v65
    %v74 = vsub.f32 0.0, %v66
    %v75 = vsub.f32 0.0, %v67
    %v76 = vmul.f32 %v68, 1.442695
    %v77 = vpow.pop %v76
    %v78 = vmul.f32 %v69, 1.442695
    %v79 = vpow.pop %v78
    %v80 = vmul.f32 %v70, 1.442695
    %v81 = vpow.pop %v80
    %v82 = vmul.f32 %v71, 1.442695
    %v83 = vpow.pop %v82
    %v84 = vmul.f32 %v72, 1.442695
    %v85 = vpow.pop %v84
    %v86 = vmul.f32 %v73, 1.442695
    %v87 = vpow.pop %v86
    %v88 = vmul.f32 %v74, 1.442695
    %v89 = vpow.pop %v88
    %v90 = vmul.f32 %v75, 1.442695
    %v91 = vpow.pop %v90
    %v92 = vadd.f32 %v77, 1.0
    %v93 = vlog2.pop %v92
    %v94 = vmul.f32 %v93, 0.6931472
    %v95 = vmul.f32 -0.5, %v77
    %v96 = vadd.f32 %v95, 1.0
    %v97 = vmul.f32 %v96, %v77
    %v98 = vand.u32 2147483647, %v77
    %vm99 = vcmp.lt.f32.partialorder %v98, 0.0004427343
    %v100 = vsel %vm99, %v97, %v94
    %v101 = vadd.f32 %v79, 1.0
    %v102 = vlog2.pop %v101
    %v103 = vmul.f32 %v102, 0.6931472
    %v104 = vmul.f32 -0.5, %v79
    %v105 = vadd.f32 %v104, 1.0
    %v106 = vmul.f32 %v105, %v79
    %v107 = vand.u32 2147483647, %v79
    %vm108 = vcmp.lt.f32.partialorder %v107, 0.0004427343
    %v109 = vsel %vm108, %v106, %v103
    %v110 = vadd.f32 %v81, 1.0
    %v111 = vlog2.pop %v110
    %v112 = vmul.f32 %v111, 0.6931472
    %v113 = vmul.f32 -0.5, %v81
    %v114 = vadd.f32 %v113, 1.0
    %v115 = vmul.f32 %v114, %v81
    %v116 = vand.u32 2147483647, %v81
    %vm117 = vcmp.lt.f32.partialorder %v116, 0.0004427343
    %v118 = vsel %vm117, %v115, %v112
    %v119 = vadd.f32 %v83, 1.0
    %v120 = vlog2.pop %v119
    %v121 = vmul.f32 %v120, 0.6931472
    %v122 = vmul.f32 -0.5, %v83
    %v123 = vadd.f32 %v122, 1.0
    %v124 = vmul.f32 %v123, %v83
    %v125 = vand.u32 2147483647, %v83
    %vm126 = vcmp.lt.f32.partialorder %v125, 0.0004427343
    %v127 = vsel %vm126, %v124, %v121
    %v128 = vadd.f32 %v85, 1.0
    %v129 = vlog2.pop %v128
    %v130 = vmul.f32 %v129, 0.6931472
    %v131 = vmul.f32 -0.5, %v85
    %v132 = vadd.f32 %v131, 1.0
    %v133 = vmul.f32 %v132, %v85
    %v134 = vand.u32 2147483647, %v85
    %vm135 = vcmp.lt.f32.partialorder %v134, 0.0004427343
    %v136 = vsel %vm135, %v133, %v130
    %v137 = vadd.f32 %v87, 1.0
    %v138 = vlog2.pop %v137
    %v139 = vmul.f32 %v138, 0.6931472
    %v140 = vmul.f32 -0.5, %v87
    %v141 = vadd.f32 %v140, 1.0
    %v142 = vmul.f32 %v141, %v87
    %v143 = vand.u32 2147483647, %v87
    %vm144 = vcmp.lt.f32.partialorder %v143, 0.0004427343
    %v145 = vsel %vm144, %v142, %v139
    %v146 = vadd.f32 %v89, 1.0
    %v147 = vlog2.pop %v146
    %v148 = vmul.f32 %v147, 0.6931472
    %v149 = vmul.f32 -0.5, %v89
    %v150 = vadd.f32 %v149, 1.0
    %v151 = vmul.f32 %v150, %v89
    %v152 = vand.u32 2147483647, %v89
    %vm153 = vcmp.lt.f32.partialorder %v152, 0.0004427343
    %v154 = vsel %vm153, %v151, %v148
    %v155 = vadd.f32 %v91, 1.0
    %v156 = vlog2.pop %v155
    %v157 = vmul.f32 %v156, 0.6931472
    %v158 = vmul.f32 -0.5, %v91
    %v159 = vadd.f32 %v158, 1.0
    %v160 = vmul.f32 %v159, %v91
    %v161 = vand.u32 2147483647, %v91
    %vm162 = vcmp.lt.f32.partialorder %v161, 0.0004427343
    %v163 = vsel %vm162, %v160, %v157
    %v164 = vmax.f32 %v44, 0.0
    %v165 = vmax.f32 %v45, 0.0
    %v166 = vmax.f32 %v46, 0.0
    %v167 = vmax.f32 %v47, 0.0
    %v168 = vmax.f32 %v48, 0.0
    %v169 = vmax.f32 %v49, 0.0
    %v170 = vmax.f32 %v50, 0.0
    %v171 = vmax.f32 %v51, 0.0
    %v172 = vmul.f32 %v44, %v52
    %v173 = vmul.f32 %v45, %v53
    %v174 = vmul.f32 %v46, %v54
    %v175 = vmul.f32 %v47, %v55
    %v176 = vmul.f32 %v48, %v56
    %v177 = vmul.f32 %v49, %v57
    %v178 = vmul.f32 %v50, %v58
    %v179 = vmul.f32 %v51, %v59
    %v180 = vsub.f32 %v164, %v172
    %v181 = vsub.f32 %v165, %v173
    %v182 = vsub.f32 %v166, %v174
    %v183 = vsub.f32 %v167, %v175
    %v184 = vsub.f32 %v168, %v176
    %v185 = vsub.f32 %v169, %v177
    %v186 = vsub.f32 %v170, %v178
    %v187 = vsub.f32 %v171, %v179
    %v188 = vadd.f32 %v180, %v100
    %v189 = vadd.f32 %v181, %v109
    %v190 = vadd.f32 %v182, %v118
    %v191 = vadd.f32 %v183, %v127
    %v192 = vadd.f32 %v184, %v136
    %v193 = vadd.f32 %v185, %v145
    %v194 = vadd.f32 %v186, %v154
    %v195 = vadd.f32 %v187, %v163
    %v196 = vadd.f32 %v77, 1.0
    %v197 = vadd.f32 %v79, 1.0
    %v198 = vadd.f32 %v81, 1.0
    %v199 = vadd.f32 %v83, 1.0
    %v200 = vadd.f32 %v85, 1.0
    %v201 = vadd.f32 %v87, 1.0
    %v202 = vadd.f32 %v89, 1.0
    %v203 = vadd.f32 %v91, 1.0
    %v204 = vrcp.pop %v196
    %v205 = vrcp.pop %v197
    %v206 = vrcp.pop %v198
    %v207 = vrcp.pop %v199
    %v208 = vrcp.pop %v200
    %v209 = vrcp.pop %v201
    %v210 = vrcp.pop %v202
    %v211 = vrcp.pop %v203
    %v212 = vmul.f32 %v196, %v204
    %v213 = vmul.f32 %v197, %v205
    %v214 = vmul.f32 %v198, %v206
    %v215 = vmul.f32 %v199, %v207
    %v216 = vmul.f32 %v200, %v208
    %v217 = vmul.f32 %v201, %v209
    %v218 = vmul.f32 %v202, %v210
    %v219 = vmul.f32 %v203, %v211
    %v220 = vsub.f32 2.0, %v212
    %v221 = vsub.f32 2.0, %v213
    %v222 = vsub.f32 2.0, %v214
    %v223 = vsub.f32 2.0, %v215
    %v224 = vsub.f32 2.0, %v216
    %v225 = vsub.f32 2.0, %v217
    %v226 = vsub.f32 2.0, %v218
    %v227 = vsub.f32 2.0, %v219
    %v228 = vmul.f32 %v204, %v220
    %v229 = vmul.f32 %v205, %v221
    %v230 = vmul.f32 %v206, %v222
    %v231 = vmul.f32 %v207, %v223
    %v232 = vmul.f32 %v208, %v224
    %v233 = vmul.f32 %v209, %v225
    %v234 = vmul.f32 %v210, %v226
    %v235 = vmul.f32 %v211, %v227
    %vm236 = vcmp.ge.f32.partialorder %v44, 0.0
    %vm237 = vcmp.ge.f32.partialorder %v45, 0.0
    %vm238 = vcmp.ge.f32.partialorder %v46, 0.0
    %vm239 = vcmp.ge.f32.partialorder %v47, 0.0
    %vm240 = vcmp.ge.f32.partialorder %v48, 0.0
    %vm241 = vcmp.ge.f32.partialorder %v49, 0.0
    %vm242 = vcmp.ge.f32.partialorder %v50, 0.0
    %vm243 = vcmp.ge.f32.partialorder %v51, 0.0
    %v244 = vsel %vm236, 1.0, %v77
    %v245 = vsel %vm237, 1.0, %v79
    %v246 = vsel %vm238, 1.0, %v81
    %v247 = vsel %vm239, 1.0, %v83
    %v248 = vsel %vm240, 1.0, %v85
    %v249 = vsel %vm241, 1.0, %v87
    %v250 = vsel %vm242, 1.0, %v89
    %v251 = vsel %vm243, 1.0, %v91
    %v252 = vmul.f32 %v244, %v228
    %v253 = vmul.f32 %v245, %v229
    %v254 = vmul.f32 %v246, %v230
    %v255 = vmul.f32 %v247, %v231
    %v256 = vmul.f32 %v248, %v232
    %v257 = vmul.f32 %v249, %v233
    %v258 = vmul.f32 %v250, %v234
    %v259 = vmul.f32 %v251, %v235
    %v260 = vsel %vm236, %v77, 1.0
    %v261 = vsel %vm237, %v79, 1.0
    %v262 = vsel %vm238, %v81, 1.0
    %v263 = vsel %vm239, %v83, 1.0
    %v264 = vsel %vm240, %v85, 1.0
    %v265 = vsel %vm241, %v87, 1.0
    %v266 = vsel %vm242, %v89, 1.0
    %v267 = vsel %vm243, %v91, 1.0
    %v268 = vmul.f32 %v260, %v228
    %v269 = vmul.f32 %v261, %v229
    %v270 = vmul.f32 %v262, %v230
    %v271 = vmul.f32 %v263, %v231
    %v272 = vmul.f32 %v264, %v232
    %v273 = vmul.f32 %v265, %v233
    %v274 = vmul.f32 %v266, %v234
    %v275 = vmul.f32 %v267, %v235
    %v276 = vmul.f32 %v52, %v268
    %v277 = vmul.f32 %v53, %v269
    %v278 = vmul.f32 %v54, %v270
    %v279 = vmul.f32 %v55, %v271
    %v280 = vmul.f32 %v56, %v272
    %v281 = vmul.f32 %v57, %v273
    %v282 = vmul.f32 %v58, %v274
    %v283 = vmul.f32 %v59, %v275
    %v284 = vsub.f32 1.0, %v52
    %v285 = vsub.f32 1.0, %v53
    %v286 = vsub.f32 1.0, %v54
    %v287 = vsub.f32 1.0, %v55
    %v288 = vsub.f32 1.0, %v56
    %v289 = vsub.f32 1.0, %v57
    %v290 = vsub.f32 1.0, %v58
    %v291 = vsub.f32 1.0, %v59
    %v292 = vmul.f32 %v284, %v252
    %v293 = vmul.f32 %v285, %v253
    %v294 = vmul.f32 %v286, %v254
    %v295 = vmul.f32 %v287, %v255
    %v296 = vmul.f32 %v288, %v256
    %v297 = vmul.f32 %v289, %v257
    %v298 = vmul.f32 %v290, %v258
    %v299 = vmul.f32 %v291, %v259
    %v300 = vadd.f32 %v276, %v292
    %v301 = vadd.f32 %v277, %v293
    %v302 = vadd.f32 %v278, %v294
    %v303 = vadd.f32 %v279, %v295
    %v304 = vadd.f32 %v280, %v296
    %v305 = vadd.f32 %v281, %v297
    %v306 = vadd.f32 %v282, %v298
    %v307 = vadd.f32 %v283, %v299
    %v308 = vmul.f32 %v300, %v300
    %v309 = vmul.f32 %v301, %v301
    %v310 = vmul.f32 %v302, %v302
    %v311 = vmul.f32 %v303, %v303
    %v312 = vmul.f32 %v304, %v304
    %v313 = vmul.f32 %v305, %v305
    %v314 = vmul.f32 %v306, %v306
    %v315 = vmul.f32 %v307, %v307
    %v316 = vmul.f32 %v308, %v188
    %v317 = vmul.f32 %v309, %v189
    %v318 = vmul.f32 %v310, %v190
    %v319 = vmul.f32 %v311, %v191
    %v320 = vmul.f32 %v312, %v192
    %v321 = vmul.f32 %v313, %v193
    %v322 = vmul.f32 %v314, %v194
    %v323 = vmul.f32 %v315, %v195
    %v324 = vadd.f32 %v316, %v317
    %v325 = vadd.f32 %v324, %v318
    %v326 = vadd.f32 %v325, %v319
    %v327 = vadd.f32 %v326, %v320
    %v328 = vadd.f32 %v327, %v321
    %v329 = vadd.f32 %v328, %v322
    %v330 = vadd.f32 %v329, %v323
    %331 = vadd.xlane.f32.xlu0 %v330
    %v332 = vpop.xlane.xlu0 %331
    %v333 = vrot.slane %v332, 4
    %v334 = vadd.f32 %v332, %v333
    %v335 = vrot.slane %v334, 2
    %v336 = vadd.f32 %v334, %v335
    %v337 = vrot.slane %v336, 1
    %v338 = vadd.f32 %v336, %v337
    %s339 = vtos %v338
    %s340 = scalar_lea.smem [#allocation7], 0
    %341 = sst [smem:[%s340]] %s339
    // Predicated region
    $region18: #{tpu_custom_call.1} parent=1 // pred_check
      _
    $region19: #{tpu_custom_call.1} parent=1 // pred_check_branch
      %343 = sbr.rel (0) target = $region21
    $region20: #{tpu_custom_call.1} parent=1 // pred_region
      %345 = vsyncadd [#allocation4], 0
      %s347 = sshll.u32 %s2, 4
      %s348 = int_to_ptr.hbm [resolvable:$true] %s347
      %350 = dma.smem_to_hbm [#allocation7], 16, %s348, [#allocation4]
    $region21: #{tpu_custom_call.1} parent=1 // pred_fallthru
      _
    // Predicated region
    $region22: #{tpu_custom_call.1} parent=1 // pred_check
      _
    $region23: #{tpu_custom_call.1} parent=1 // pred_check_branch
      %352 = sbr.rel (0) target = $region25
    $region24: #{tpu_custom_call.1} parent=1 // pred_region
      %354 = dma.done [#allocation4], 16
    $region25: #{tpu_custom_call.1} parent=1 // pred_fallthru
      _
    %355 = sfence
    %356 = vsyncpa [#allocation3], 1
    %357 = vsyncpa [#allocation6], 1
    %358 = vsyncpa [#allocation4], 1

</llo_original>
